<compile_context>
chip_gen: v7x
topology: tpu7x:2x2x1
jax: 0.10.0
libtpu: 0.0.40
codegen_flags: <defaults>
</compile_context>

<pallas_src>
import functools

import numpy as np
import jax
import jax.numpy as jnp
from jax import lax
from jax.experimental import pallas as pl
from jax.experimental.pallas import tpu as pltpu


# ----------------------------------------------------------------------------
# Schedule construction (plain numpy "glue"; mirrors diffusion_utils, init-time)
# ----------------------------------------------------------------------------
def custom_beta_schedule_discrete(timesteps: int, s: float = 0.008) -> np.ndarray:
    """DiGress-style cosine (discrete) beta schedule; returns timesteps+1 betas."""
    steps = timesteps + 2
    x = np.linspace(0, steps, steps)
    alphas_cumprod = np.cos(0.5 * np.pi * ((x / steps) + s) / (1 + s)) ** 2
    alphas_cumprod = alphas_cumprod / alphas_cumprod[0]
    alphas = alphas_cumprod[1:] / alphas_cumprod[:-1]
    betas = 1.0 - alphas
    return np.clip(betas, 0.0, 0.999).astype(np.float32)


def get_diffusion_betas_linear(timesteps: int) -> np.ndarray:
    """spec = {'start': 0, 'stop': 1, 'type': 'linear'}"""
    return np.linspace(0.0, 1.0, timesteps).astype(np.float32)


# ----------------------------------------------------------------------------
# Pallas kernel: fused dual table gather — pure scalar-unit SMEM work.
#   idx_ref    : (B,)      int32  SMEM   clamped schedule indices
#   tables_ref : (2*T,)    f32    SMEM   [0:T] = betas, [T:2T] = alphas_bar
#   out_ref    : (2, B)    f32    SMEM   row 0 = beta, row 1 = alpha_bar
# ----------------------------------------------------------------------------
_UNROLL_MAX = 256  # statically unroll the gather for typical (small) batches


def _pair_gather_kernel(t_len, idx_ref, tables_ref, out_ref):
    nb = idx_ref.shape[0]

    def lookup(i):
        k = idx_ref[i]
        out_ref[0, i] = tables_ref[k]            # beta[t]
        out_ref[1, i] = tables_ref[t_len + k]    # alpha_bar[t]

    if nb <= _UNROLL_MAX:
        # Static unroll: fully scalar, gives the LLO scheduler full visibility.
        for i in range(nb):
            lookup(i)
    else:
        # Fallback for unusually large batches.
        def body(i, carry):
            lookup(i)
            return carry
        lax.fori_loop(0, nb, body, 0)


@jax.jit
def _noise_lookup(t_flat, scale, tables_flat):
    """t_flat: (B,) f32 query times; scale: f32 scalar; tables_flat: (2*T,) f32.
    Returns (2, B) f32: row 0 = beta(t), row 1 = alpha_bar(t)."""
    t_len = tables_flat.shape[0] // 2
    # Trivial scalar math in XLA (fused); half-to-even round matches torch.round.
    idx = jnp.clip(jnp.round(t_flat * scale).astype(jnp.int32), 0, t_len - 1)
    b = idx.shape[0]
    return pl.pallas_call(
        functools.partial(_pair_gather_kernel, t_len),
        out_shape=jax.ShapeDtypeStruct((2, b), jnp.float32),
        in_specs=[
            pl.BlockSpec(memory_space=pltpu.MemorySpace.SMEM),   # idx
            pl.BlockSpec(memory_space=pltpu.MemorySpace.SMEM),   # tables
        ],
        out_specs=pl.BlockSpec(memory_space=pltpu.MemorySpace.SMEM),
    )(idx, tables_flat)


# ----------------------------------------------------------------------------
# Module
# ----------------------------------------------------------------------------
class PredefinedNoiseScheduleDiscrete:
    def __init__(self, noise_schedule, timesteps, noise='cos'):
        self.timesteps = timesteps
        if noise == 'cos':
            betas = custom_beta_schedule_discrete(timesteps)
        else:
            betas = get_diffusion_betas_linear(timesteps)

        self.betas = jnp.asarray(betas, dtype=jnp.float32)
        self.alphas = 1.0 - self.betas
        self.alphas_bar = jnp.cumprod(self.alphas)

        # Single flat lookup table consumed by the fused Pallas kernel.
        self._tables_flat = jnp.concatenate([self.betas, self.alphas_bar])
        self._t_len = int(self.betas.shape[0])

    # -- internal -------------------------------------------------------------
    def _prepare(self, t_normalized=None, t_int=None):
        assert int(t_normalized is None) + int(t_int is None) == 1
        if t_int is None:
            t = jnp.asarray(t_normalized, jnp.float32)
            scale = jnp.asarray(self.timesteps, dtype=jnp.float32)
        else:
            t = jnp.asarray(t_int).astype(jnp.float32)
            scale = jnp.asarray(1.0, dtype=jnp.float32)
        return t, scale

    # -- public API -----------------------------------------------------------
    def forward_and_alpha_bar(self, t_normalized=None, t_int=None):
        """Fused single-kernel lookup. Returns (beta(t), alpha_bar(t))."""
        t, scale = self._prepare(t_normalized, t_int)
        shape = t.shape
        out = _noise_lookup(t.reshape(-1), scale, self._tables_flat)
        return out[0].reshape(shape), out[1].reshape(shape)

    def forward(self, t_normalized=None, t_int=None):
        return self.forward_and_alpha_bar(t_normalized, t_int)[0]

    def get_alpha_bar(self, t_normalized=None, t_int=None):
        return self.forward_and_alpha_bar(t_normalized, t_int)[1]

    __call__ = forward


# ----------------------------------------------------------------------------
# Demo / correctness check
# ----------------------------------------------------------------------------
if __name__ == "__main__":
    timesteps = 500
    sched = PredefinedNoiseScheduleDiscrete('cosine', timesteps, noise='cos')

    key = jax.random.PRNGKey(0)
    k1, k2 = jax.random.split(key)
    # small batch of times, shape (8, 1) like typical diffusion code
    t_norm = jax.random.uniform(k1, (8, 1), dtype=jnp.float32)
    t_int = jax.random.randint(k2, (8, 1), 0, timesteps + 1)

    # fused path (single kernel produces both quantities)
    beta_n, abar_n = sched.forward_and_alpha_bar(t_normalized=t_norm)
    jax.block_until_ready((beta_n, abar_n))
    # separate-API path (t_int route)
    out_beta_i = jax.block_until_ready(sched.forward(t_int=t_int))
    out_abar_i = jax.block_until_ready(sched.get_alpha_bar(t_int=t_int))

    # pure-JAX reference (same semantics as the torch module)
    ref_idx = jnp.round(t_norm * timesteps).astype(jnp.int32)
    ref_beta_n = sched.betas[ref_idx]
    ref_abar_n = sched.alphas_bar[ref_idx]
    ref_beta_i = sched.betas[t_int]
    ref_abar_i = sched.alphas_bar[t_int]

    assert beta_n.shape == t_norm.shape and beta_n.dtype == jnp.float32
    assert abar_n.shape == t_norm.shape
    assert out_beta_i.shape == t_int.shape
    np.testing.assert_allclose(np.asarray(beta_n), np.asarray(ref_beta_n), rtol=1e-6, atol=1e-7)
    np.testing.assert_allclose(np.asarray(abar_n), np.asarray(ref_abar_n), rtol=1e-6, atol=1e-7)
    np.testing.assert_allclose(np.asarray(out_beta_i), np.asarray(ref_beta_i), rtol=1e-6, atol=1e-7)
    np.testing.assert_allclose(np.asarray(out_abar_i), np.asarray(ref_abar_i), rtol=1e-6, atol=1e-7)

    print("KERNEL_OK")
</pallas_src>

<mosaic_0001>
module attributes {stable_mosaic.version = 11 : i64} {
  func.func @_pair_gather_kernel(%arg0: memref<8xi32, #tpu.memory_space<smem>>, %arg1: memref<1002xf32, #tpu.memory_space<smem>>, %arg2: memref<2x8xf32, #tpu.memory_space<smem>>) attributes {dimension_semantics = [], scalar_prefetch = 0 : i64, scratch_operands = 0 : i64, tpu.core_type = #tpu.core_type<tc>} {
    %c0 = arith.constant 0 : index
    %0 = memref.load %arg0[%c0] : memref<8xi32, #tpu.memory_space<smem>>
    %1 = arith.index_cast %0 : i32 to index
    %2 = memref.load %arg1[%1] : memref<1002xf32, #tpu.memory_space<smem>>
    %c0_0 = arith.constant 0 : index
    %c0_1 = arith.constant 0 : index
    %3 = memref.load %arg2[%c0_0, %c0_1] : memref<2x8xf32, #tpu.memory_space<smem>>
    memref.store %2, %arg2[%c0_0, %c0_1] : memref<2x8xf32, #tpu.memory_space<smem>>
    %c501_i32 = arith.constant 501 : i32
    %4 = arith.addi %c501_i32, %0 : i32
    %5 = arith.index_cast %4 : i32 to index
    %6 = memref.load %arg1[%5] : memref<1002xf32, #tpu.memory_space<smem>>
    %c1 = arith.constant 1 : index
    %c0_2 = arith.constant 0 : index
    %7 = memref.load %arg2[%c1, %c0_2] : memref<2x8xf32, #tpu.memory_space<smem>>
    memref.store %6, %arg2[%c1, %c0_2] : memref<2x8xf32, #tpu.memory_space<smem>>
    %c1_3 = arith.constant 1 : index
    %8 = memref.load %arg0[%c1_3] : memref<8xi32, #tpu.memory_space<smem>>
    %9 = arith.index_cast %8 : i32 to index
    %10 = memref.load %arg1[%9] : memref<1002xf32, #tpu.memory_space<smem>>
    %c0_4 = arith.constant 0 : index
    %c1_5 = arith.constant 1 : index
    %11 = memref.load %arg2[%c0_4, %c1_5] : memref<2x8xf32, #tpu.memory_space<smem>>
    memref.store %10, %arg2[%c0_4, %c1_5] : memref<2x8xf32, #tpu.memory_space<smem>>
    %c501_i32_6 = arith.constant 501 : i32
    %12 = arith.addi %c501_i32_6, %8 : i32
    %13 = arith.index_cast %12 : i32 to index
    %14 = memref.load %arg1[%13] : memref<1002xf32, #tpu.memory_space<smem>>
    %c1_7 = arith.constant 1 : index
    %c1_8 = arith.constant 1 : index
    %15 = memref.load %arg2[%c1_7, %c1_8] : memref<2x8xf32, #tpu.memory_space<smem>>
    memref.store %14, %arg2[%c1_7, %c1_8] : memref<2x8xf32, #tpu.memory_space<smem>>
    %c2 = arith.constant 2 : index
    %16 = memref.load %arg0[%c2] : memref<8xi32, #tpu.memory_space<smem>>
    %17 = arith.index_cast %16 : i32 to index
    %18 = memref.load %arg1[%17] : memref<1002xf32, #tpu.memory_space<smem>>
    %c0_9 = arith.constant 0 : index
    %c2_10 = arith.constant 2 : index
    %19 = memref.load %arg2[%c0_9, %c2_10] : memref<2x8xf32, #tpu.memory_space<smem>>
    memref.store %18, %arg2[%c0_9, %c2_10] : memref<2x8xf32, #tpu.memory_space<smem>>
    %c501_i32_11 = arith.constant 501 : i32
    %20 = arith.addi %c501_i32_11, %16 : i32
    %21 = arith.index_cast %20 : i32 to index
    %22 = memref.load %arg1[%21] : memref<1002xf32, #tpu.memory_space<smem>>
    %c1_12 = arith.constant 1 : index
    %c2_13 = arith.constant 2 : index
    %23 = memref.load %arg2[%c1_12, %c2_13] : memref<2x8xf32, #tpu.memory_space<smem>>
    memref.store %22, %arg2[%c1_12, %c2_13] : memref<2x8xf32, #tpu.memory_space<smem>>
    %c3 = arith.constant 3 : index
    %24 = memref.load %arg0[%c3] : memref<8xi32, #tpu.memory_space<smem>>
    %25 = arith.index_cast %24 : i32 to index
    %26 = memref.load %arg1[%25] : memref<1002xf32, #tpu.memory_space<smem>>
    %c0_14 = arith.constant 0 : index
    %c3_15 = arith.constant 3 : index
    %27 = memref.load %arg2[%c0_14, %c3_15] : memref<2x8xf32, #tpu.memory_space<smem>>
    memref.store %26, %arg2[%c0_14, %c3_15] : memref<2x8xf32, #tpu.memory_space<smem>>
    %c501_i32_16 = arith.constant 501 : i32
    %28 = arith.addi %c501_i32_16, %24 : i32
    %29 = arith.index_cast %28 : i32 to index
    %30 = memref.load %arg1[%29] : memref<1002xf32, #tpu.memory_space<smem>>
    %c1_17 = arith.constant 1 : index
    %c3_18 = arith.constant 3 : index
    %31 = memref.load %arg2[%c1_17, %c3_18] : memref<2x8xf32, #tpu.memory_space<smem>>
    memref.store %30, %arg2[%c1_17, %c3_18] : memref<2x8xf32, #tpu.memory_space<smem>>
    %c4 = arith.constant 4 : index
    %32 = memref.load %arg0[%c4] : memref<8xi32, #tpu.memory_space<smem>>
    %33 = arith.index_cast %32 : i32 to index
    %34 = memref.load %arg1[%33] : memref<1002xf32, #tpu.memory_space<smem>>
    %c0_19 = arith.constant 0 : index
    %c4_20 = arith.constant 4 : index
    %35 = memref.load %arg2[%c0_19, %c4_20] : memref<2x8xf32, #tpu.memory_space<smem>>
    memref.store %34, %arg2[%c0_19, %c4_20] : memref<2x8xf32, #tpu.memory_space<smem>>
    %c501_i32_21 = arith.constant 501 : i32
    %36 = arith.addi %c501_i32_21, %32 : i32
    %37 = arith.index_cast %36 : i32 to index
    %38 = memref.load %arg1[%37] : memref<1002xf32, #tpu.memory_space<smem>>
    %c1_22 = arith.constant 1 : index
    %c4_23 = arith.constant 4 : index
    %39 = memref.load %arg2[%c1_22, %c4_23] : memref<2x8xf32, #tpu.memory_space<smem>>
    memref.store %38, %arg2[%c1_22, %c4_23] : memref<2x8xf32, #tpu.memory_space<smem>>
    %c5 = arith.constant 5 : index
    %40 = memref.load %arg0[%c5] : memref<8xi32, #tpu.memory_space<smem>>
    %41 = arith.index_cast %40 : i32 to index
    %42 = memref.load %arg1[%41] : memref<1002xf32, #tpu.memory_space<smem>>
    %c0_24 = arith.constant 0 : index
    %c5_25 = arith.constant 5 : index
    %43 = memref.load %arg2[%c0_24, %c5_25] : memref<2x8xf32, #tpu.memory_space<smem>>
    memref.store %42, %arg2[%c0_24, %c5_25] : memref<2x8xf32, #tpu.memory_space<smem>>
    %c501_i32_26 = arith.constant 501 : i32
    %44 = arith.addi %c501_i32_26, %40 : i32
    %45 = arith.index_cast %44 : i32 to index
    %46 = memref.load %arg1[%45] : memref<1002xf32, #tpu.memory_space<smem>>
    %c1_27 = arith.constant 1 : index
    %c5_28 = arith.constant 5 : index
    %47 = memref.load %arg2[%c1_27, %c5_28] : memref<2x8xf32, #tpu.memory_space<smem>>
    memref.store %46, %arg2[%c1_27, %c5_28] : memref<2x8xf32, #tpu.memory_space<smem>>
    %c6 = arith.constant 6 : index
    %48 = memref.load %arg0[%c6] : memref<8xi32, #tpu.memory_space<smem>>
    %49 = arith.index_cast %48 : i32 to index
    %50 = memref.load %arg1[%49] : memref<1002xf32, #tpu.memory_space<smem>>
    %c0_29 = arith.constant 0 : index
    %c6_30 = arith.constant 6 : index
    %51 = memref.load %arg2[%c0_29, %c6_30] : memref<2x8xf32, #tpu.memory_space<smem>>
    memref.store %50, %arg2[%c0_29, %c6_30] : memref<2x8xf32, #tpu.memory_space<smem>>
    %c501_i32_31 = arith.constant 501 : i32
    %52 = arith.addi %c501_i32_31, %48 : i32
    %53 = arith.index_cast %52 : i32 to index
    %54 = memref.load %arg1[%53] : memref<1002xf32, #tpu.memory_space<smem>>
    %c1_32 = arith.constant 1 : index
    %c6_33 = arith.constant 6 : index
    %55 = memref.load %arg2[%c1_32, %c6_33] : memref<2x8xf32, #tpu.memory_space<smem>>
    memref.store %54, %arg2[%c1_32, %c6_33] : memref<2x8xf32, #tpu.memory_space<smem>>
    %c7 = arith.constant 7 : index
    %56 = memref.load %arg0[%c7] : memref<8xi32, #tpu.memory_space<smem>>
    %57 = arith.index_cast %56 : i32 to index
    %58 = memref.load %arg1[%57] : memref<1002xf32, #tpu.memory_space<smem>>
    %c0_34 = arith.constant 0 : index
    %c7_35 = arith.constant 7 : index
    %59 = memref.load %arg2[%c0_34, %c7_35] : memref<2x8xf32, #tpu.memory_space<smem>>
    memref.store %58, %arg2[%c0_34, %c7_35] : memref<2x8xf32, #tpu.memory_space<smem>>
    %c501_i32_36 = arith.constant 501 : i32
    %60 = arith.addi %c501_i32_36, %56 : i32
    %61 = arith.index_cast %60 : i32 to index
    %62 = memref.load %arg1[%61] : memref<1002xf32, #tpu.memory_space<smem>>
    %c1_37 = arith.constant 1 : index
    %c7_38 = arith.constant 7 : index
    %63 = memref.load %arg2[%c1_37, %c7_38] : memref<2x8xf32, #tpu.memory_space<smem>>
    memref.store %62, %arg2[%c1_37, %c7_38] : memref<2x8xf32, #tpu.memory_space<smem>>
    return
  }
}

</mosaic_0001>

<llo_original>
// kernel: _noise_lookup.1
$region0: #{_noise_lookup.1}
  #allocation0 [shape = 'u32[]', space=smem, size = 0x4, offset = 0x4, fixed_abs, tag = 'smem constant byte address 0x4 - core index']
  #allocation1 [shape = 'u32[144,128]{1,0:T(1,128)}', space=vmem, size = 0x12000, scoped, tag = 'internal scratch']
  %s0 = inlined_call_operand.vmem [shape: s32[8], index: 0, kind: input, shape index: {}]
  %s1 = inlined_call_operand.vmem [shape: f32[1002], index: 1, kind: input, shape index: {}]
  %s2 = inlined_call_operand.hbm [shape: f32[2,8], index: 2, kind: output, shape index: {}]
  %s3 = sld [smem:[#allocation0]]
  $region26: #{_noise_lookup.1} parent=0
    _
  %s5 = ssub.s32 1, %s3
  %s6 = scalar_select 0, %s5, %s3
  $region1: #{_noise_lookup.1} parent=0
    #allocation2 [shape = 'u8[512]{0}', space=smem, size = 0x200, scoped, tag = 'input window, operand 0, single buffered']
    #allocation3 [shape = 's32[1]{0}', space=sflag, size = 0x4, scoped, tag = 'scoped memory for _noise_lookup.1']
    #allocation4 [shape = 's32[1]{0}', space=sflag, size = 0x4, scoped, tag = 'scoped memory for _noise_lookup.1']
    #allocation5 [shape = 'u8[4096]{0}', space=smem, size = 0x1000, scoped, tag = 'input window, operand 1, single buffered']
    #allocation6 [shape = 's32[1]{0}', space=sflag, size = 0x4, scoped, tag = 'scoped memory for _noise_lookup.1']
    #allocation7 [shape = 'u8[1024]{0}', space=smem, size = 0x400, scoped, tag = 'output window, operand 0, single buffered']
    %7 = vsyncpa [#allocation4], 0
    %8 = vsyncpa [#allocation6], 0
    %9 = vsyncpa [#allocation3], 0
    // Predicated region
    $region2: #{_noise_lookup.1} parent=1 // pred_check
      _
    $region3: #{_noise_lookup.1} parent=1 // pred_check_branch
      %11 = sbr.rel (0) target = $region5
    $region4: #{_noise_lookup.1} parent=1 // pred_region
      %s13 = ssub.s32 16, 16
      %14 = vsyncadd [#allocation4], %s13
      %s16 = sshll.u32 %s0, 4
      %s17 = int_to_ptr.vmem [resolvable:$true] %s16
      %19 = dma.vmem_to_smem %s17, 16, [#allocation2], [#allocation4]
    $region5: #{_noise_lookup.1} parent=1 // pred_fallthru
      _
    // Predicated region
    $region6: #{_noise_lookup.1} parent=1 // pred_check
      _
    $region7: #{_noise_lookup.1} parent=1 // pred_check_branch
      %21 = sbr.rel (0) target = $region9
    $region8: #{_noise_lookup.1} parent=1 // pred_region
      %s23 = ssub.s32 128, 128
      %24 = vsyncadd [#allocation6], %s23
      %s26 = sshll.u32 %s1, 4
      %s27 = int_to_ptr.vmem [resolvable:$true] %s26
      %29 = dma.vmem_to_smem %s27, 128, [#allocation5], [#allocation6]
    $region9: #{_noise_lookup.1} parent=1 // pred_fallthru
      _
    // Predicated region
    $region10: #{_noise_lookup.1} parent=1 // pred_check
      _
    $region11: #{_noise_lookup.1} parent=1 // pred_check_branch
      %31 = sbr.rel (0) target = $region13
    $region12: #{_noise_lookup.1} parent=1 // pred_region
      %32 = dma.done [#allocation4], 16
    $region13: #{_noise_lookup.1} parent=1 // pred_fallthru
      _
    // Predicated region
    $region14: #{_noise_lookup.1} parent=1 // pred_check
      _
    $region15: #{_noise_lookup.1} parent=1 // pred_check_branch
      %34 = sbr.rel (0) target = $region17
    $region16: #{_noise_lookup.1} parent=1 // pred_region
      %35 = dma.done [#allocation6], 128
    $region17: #{_noise_lookup.1} parent=1 // pred_fallthru
      _
    %36 = sfence
    %s37 = sld [smem:[#allocation2]]
    %s38 = sld [smem:[#allocation5 + %s37]]
    %s39 = scalar_lea.smem [#allocation7], 0
    %40 = sst [smem:[%s39]] %s38
    %s41 = sadd.s32 %s37, 501
    %s42 = sld [smem:[#allocation5 + %s41]]
    %s43 = scalar_lea.smem [#allocation7], 128
    %44 = sst [smem:[%s43]] %s42
    %s45 = sld [smem:[#allocation2 + $0x1]]
    %s46 = sld [smem:[#allocation5 + %s45]]
    %s47 = scalar_lea.smem [#allocation7], 1
    %48 = sst [smem:[%s47]] %s46
    %s49 = sadd.s32 %s45, 501
    %s50 = sld [smem:[#allocation5 + %s49]]
    %s51 = scalar_lea.smem [#allocation7], 129
    %52 = sst [smem:[%s51]] %s50
    %s53 = sld [smem:[#allocation2 + $0x2]]
    %s54 = sld [smem:[#allocation5 + %s53]]
    %s55 = scalar_lea.smem [#allocation7], 2
    %56 = sst [smem:[%s55]] %s54
    %s57 = sadd.s32 %s53, 501
    %s58 = sld [smem:[#allocation5 + %s57]]
    %s59 = scalar_lea.smem [#allocation7], 130
    %60 = sst [smem:[%s59]] %s58
    %s61 = sld [smem:[#allocation2 + $0x3]]
    %s62 = sld [smem:[#allocation5 + %s61]]
    %s63 = scalar_lea.smem [#allocation7], 3
    %64 = sst [smem:[%s63]] %s62
    %s65 = sadd.s32 %s61, 501
    %s66 = sld [smem:[#allocation5 + %s65]]
    %s67 = scalar_lea.smem [#allocation7], 131
    %68 = sst [smem:[%s67]] %s66
    %s69 = sld [smem:[#allocation2 + $0x4]]
    %s70 = sld [smem:[#allocation5 + %s69]]
    %s71 = scalar_lea.smem [#allocation7], 4
    %72 = sst [smem:[%s71]] %s70
    %s73 = sadd.s32 %s69, 501
    %s74 = sld [smem:[#allocation5 + %s73]]
    %s75 = scalar_lea.smem [#allocation7], 132
    %76 = sst [smem:[%s75]] %s74
    %s77 = sld [smem:[#allocation2 + $0x5]]
    %s78 = sld [smem:[#allocation5 + %s77]]
    %s79 = scalar_lea.smem [#allocation7], 5
    %80 = sst [smem:[%s79]] %s78
    %s81 = sadd.s32 %s77, 501
    %s82 = sld [smem:[#allocation5 + %s81]]
    %s83 = scalar_lea.smem [#allocation7], 133
    %84 = sst [smem:[%s83]] %s82
    %s85 = sld [smem:[#allocation2 + $0x6]]
    %s86 = sld [smem:[#allocation5 + %s85]]
    %s87 = scalar_lea.smem [#allocation7], 6
    %88 = sst [smem:[%s87]] %s86
    %s89 = sadd.s32 %s85, 501
    %s90 = sld [smem:[#allocation5 + %s89]]
    %s91 = scalar_lea.smem [#allocation7], 134
    %92 = sst [smem:[%s91]] %s90
    %s93 = sld [smem:[#allocation2 + $0x7]]
    %s94 = sld [smem:[#allocation5 + %s93]]
    %s95 = scalar_lea.smem [#allocation7], 7
    %96 = sst [smem:[%s95]] %s94
    %s97 = sadd.s32 %s93, 501
    %s98 = sld [smem:[#allocation5 + %s97]]
    %s99 = scalar_lea.smem [#allocation7], 135
    %100 = sst [smem:[%s99]] %s98
    // Predicated region
    $region18: #{_noise_lookup.1} parent=1 // pred_check
      _
    $region19: #{_noise_lookup.1} parent=1 // pred_check_branch
      %102 = sbr.rel (0) target = $region21
    $region20: #{_noise_lookup.1} parent=1 // pred_region
      %s104 = ssub.s32 32, 32
      %105 = vsyncadd [#allocation3], %s104
      %108 = dma.smem_to_hbm [#allocation7], 32, %s2, [#allocation3]
    $region21: #{_noise_lookup.1} parent=1 // pred_fallthru
      _
    // Predicated region
    $region22: #{_noise_lookup.1} parent=1 // pred_check
      _
    $region23: #{_noise_lookup.1} parent=1 // pred_check_branch
      %110 = sbr.rel (0) target = $region25
    $region24: #{_noise_lookup.1} parent=1 // pred_region
      %111 = dma.done [#allocation3], 32
    $region25: #{_noise_lookup.1} parent=1 // pred_fallthru
      _
    %112 = sfence
    %113 = vsyncpa [#allocation3], 1
    %114 = vsyncpa [#allocation4], 1
    %115 = vsyncpa [#allocation6], 1

</llo_original>
